<compile_context>
chip_gen: v7x
topology: tpu7x:2x2x1
jax: 0.10.0
libtpu: 0.0.40
codegen_flags: <defaults>
</compile_context>

<pallas_src>
import functools

import jax
import jax.numpy as jnp
from jax.experimental import pallas as pl
from jax.experimental.pallas import tpu as pltpu


_MXU_DTYPE = jnp.bfloat16


class GemmaConfig:
    def __init__(self, vocab_size, hidden_size, intermediate_size,
                 num_hidden_layers, num_attention_heads, num_key_value_heads,
                 head_dim=256, max_position_embeddings=8192, rms_norm_eps=1e-6,
                 rope_theta=10000.0, attention_bias=False,
                 attention_dropout=0.0, pad_token_id=None):
        self.vocab_size = vocab_size
        self.max_position_embeddings = max_position_embeddings
        self.hidden_size = hidden_size
        self.intermediate_size = intermediate_size
        self.num_hidden_layers = num_hidden_layers
        self.num_attention_heads = num_attention_heads
        self.num_key_value_heads = num_key_value_heads
        self.head_dim = head_dim
        self.rms_norm_eps = rms_norm_eps
        self.rope_theta = rope_theta
        self.attention_bias = attention_bias
        self.attention_dropout = attention_dropout
        self.pad_token_id = pad_token_id


def _pick_tile(dim, prefs):
    """Largest preferred tile that divides `dim`, else the full dim."""
    for p in prefs:
        if dim % p == 0:
            return p
    return dim


# ---------------------------------------------------------------------------
# Generic tiled matmul:  o = x @ w   (x:(M,K) bf16, w:(K,N) bf16 -> (M,N) f32)
# ---------------------------------------------------------------------------

def _matmul_kernel(x_ref, w_ref, o_ref, acc_ref):
    @pl.when(pl.program_id(2) == 0)
    def _():
        acc_ref[...] = jnp.zeros_like(acc_ref)

    acc_ref[...] += jnp.dot(x_ref[...], w_ref[...],
                            preferred_element_type=jnp.float32)

    @pl.when(pl.program_id(2) == pl.num_programs(2) - 1)
    def _():
        o_ref[...] = acc_ref[...].astype(o_ref.dtype)


def linear(x, w):
    M, K = x.shape
    K2, N = w.shape
    assert K == K2
    tm = _pick_tile(M, (256, 128))
    tn = _pick_tile(N, (512, 256, 128))
    tk = _pick_tile(K, (512, 256, 128))
    return pl.pallas_call(
        _matmul_kernel,
        out_shape=jax.ShapeDtypeStruct((M, N), jnp.float32),
        grid=(M // tm, N // tn, K // tk),
        in_specs=[
            pl.BlockSpec((tm, tk), lambda i, j, k: (i, k)),
            pl.BlockSpec((tk, tn), lambda i, j, k: (k, j)),
        ],
        out_specs=pl.BlockSpec((tm, tn), lambda i, j, k: (i, j)),
        scratch_shapes=[pltpu.VMEM((tm, tn), jnp.float32)],
        compiler_params=pltpu.CompilerParams(
            dimension_semantics=("parallel", "parallel", "arbitrary")),
    )(x, w)


# ---------------------------------------------------------------------------
# RMSNorm (Gemma: x * rsqrt(mean(x^2)+eps) * (1 + w)) -> bf16 for the MXU
# ---------------------------------------------------------------------------

def _rmsnorm_kernel(x_ref, w_ref, o_ref, *, eps):
    x = x_ref[...]
    var = jnp.mean(x * x, axis=-1, keepdims=True)
    o_ref[...] = (x * jax.lax.rsqrt(var + eps) * (1.0 + w_ref[...])
                  ).astype(o_ref.dtype)


def rmsnorm(x, w, eps):
    M, H = x.shape
    tm = _pick_tile(M, (512, 256, 128))
    return pl.pallas_call(
        functools.partial(_rmsnorm_kernel, eps=eps),
        out_shape=jax.ShapeDtypeStruct((M, H), _MXU_DTYPE),
        grid=(M // tm,),
        in_specs=[pl.BlockSpec((tm, H), lambda i: (i, 0)),
                  pl.BlockSpec((1, H), lambda i: (0, 0))],
        out_specs=pl.BlockSpec((tm, H), lambda i: (i, 0)),
        compiler_params=pltpu.CompilerParams(
            dimension_semantics=("parallel",)),
    )(x, w.reshape(1, H))


# ---------------------------------------------------------------------------
# Fused Q/K/V projection: one read of x, K-tiled reduction, 3 outputs (bf16)
# ---------------------------------------------------------------------------

def _qkv_kernel(x_ref, wq_ref, wk_ref, wv_ref, q_ref, k_ref, v_ref,
                accq_ref, acck_ref, accv_ref):
    kk = pl.program_id(1)

    @pl.when(kk == 0)
    def _():
        accq_ref[...] = jnp.zeros_like(accq_ref)
        acck_ref[...] = jnp.zeros_like(acck_ref)
        accv_ref[...] = jnp.zeros_like(accv_ref)

    x = x_ref[...]
    accq_ref[...] += jnp.dot(x, wq_ref[...], preferred_element_type=jnp.float32)
    acck_ref[...] += jnp.dot(x, wk_ref[...], preferred_element_type=jnp.float32)
    accv_ref[...] += jnp.dot(x, wv_ref[...], preferred_element_type=jnp.float32)

    @pl.when(kk == pl.num_programs(1) - 1)
    def _():
        q_ref[...] = accq_ref[...].astype(q_ref.dtype)
        k_ref[...] = acck_ref[...].astype(k_ref.dtype)
        v_ref[...] = accv_ref[...].astype(v_ref.dtype)


def qkv_proj(x, wq, wk, wv):
    M, H = x.shape
    Nq = wq.shape[1]
    Nkv = wk.shape[1]
    tm = _pick_tile(M, (256, 128))
    tk = _pick_tile(H, (512, 256, 128))
    return pl.pallas_call(
        _qkv_kernel,
        out_shape=(jax.ShapeDtypeStruct((M, Nq), _MXU_DTYPE),
                   jax.ShapeDtypeStruct((M, Nkv), _MXU_DTYPE),
                   jax.ShapeDtypeStruct((M, Nkv), _MXU_DTYPE)),
        grid=(M // tm, H // tk),
        in_specs=[
            pl.BlockSpec((tm, tk), lambda i, k: (i, k)),
            pl.BlockSpec((tk, Nq), lambda i, k: (k, 0)),
            pl.BlockSpec((tk, Nkv), lambda i, k: (k, 0)),
            pl.BlockSpec((tk, Nkv), lambda i, k: (k, 0)),
        ],
        out_specs=(pl.BlockSpec((tm, Nq), lambda i, k: (i, 0)),
                   pl.BlockSpec((tm, Nkv), lambda i, k: (i, 0)),
                   pl.BlockSpec((tm, Nkv), lambda i, k: (i, 0))),
        scratch_shapes=[pltpu.VMEM((tm, Nq), jnp.float32),
                        pltpu.VMEM((tm, Nkv), jnp.float32),
                        pltpu.VMEM((tm, Nkv), jnp.float32)],
        compiler_params=pltpu.CompilerParams(
            dimension_semantics=("parallel", "arbitrary")),
    )(x, wq, wk, wv)


# ---------------------------------------------------------------------------
# Gated MLP, tiled over intermediate dim I with a resident f32 accumulator
# ---------------------------------------------------------------------------

def _mlp_kernel(x_ref, wg_ref, wu_ref, wd_ref, o_ref, acc_ref):
    jj = pl.program_id(1)

    @pl.when(jj == 0)
    def _():
        acc_ref[...] = jnp.zeros_like(acc_ref)

    x = x_ref[...]                                               # (tm, H) bf16
    g = jnp.dot(x, wg_ref[...], preferred_element_type=jnp.float32)
    u = jnp.dot(x, wu_ref[...], preferred_element_type=jnp.float32)
    a = jax.nn.gelu(g, approximate=True) * u                     # f32 elementwise
    acc_ref[...] += jnp.dot(a.astype(_MXU_DTYPE), wd_ref[...],
                            preferred_element_type=jnp.float32)

    @pl.when(jj == pl.num_programs(1) - 1)
    def _():
        o_ref[...] = acc_ref[...]


def gemma_mlp(x, wg, wu, wd):
    M, H = x.shape
    I = wg.shape[1]
    tm = _pick_tile(M, (256, 128))
    ti = _pick_tile(I, (512, 256, 128))
    return pl.pallas_call(
        _mlp_kernel,
        out_shape=jax.ShapeDtypeStruct((M, H), jnp.float32),
        grid=(M // tm, I // ti),
        in_specs=[
            pl.BlockSpec((tm, H), lambda i, j: (i, 0)),
            pl.BlockSpec((H, ti), lambda i, j: (0, j)),
            pl.BlockSpec((H, ti), lambda i, j: (0, j)),
            pl.BlockSpec((ti, H), lambda i, j: (j, 0)),
        ],
        out_specs=pl.BlockSpec((tm, H), lambda i, j: (i, 0)),
        scratch_shapes=[pltpu.VMEM((tm, H), jnp.float32)],
        compiler_params=pltpu.CompilerParams(
            dimension_semantics=("parallel", "arbitrary")),
    )(x, wg, wu, wd)


# ---------------------------------------------------------------------------
# Flash attention with fused RoPE and in-kernel causal mask (GQA via index_map)
# ---------------------------------------------------------------------------

def _rotate_half(x):
    half = x.shape[-1] // 2
    return jnp.concatenate([-x[..., half:], x[..., :half]], axis=-1)


def _flash_attn_kernel(q_ref, k_ref, v_ref, cq_ref, sq_ref, ck_ref, sk_ref,
                       o_ref, qr_ref, m_ref, l_ref, acc_ref, *, scale, tile):
    qi = pl.program_id(1)
    ki = pl.program_id(2)

    @pl.when(ki == 0)
    def _():
        q = q_ref[...].astype(jnp.float32)                        # (tq, D)
        q = (q * cq_ref[...] + _rotate_half(q) * sq_ref[...]) * scale
        qr_ref[...] = q.astype(qr_ref.dtype)
        m_ref[...] = jnp.full_like(m_ref, -jnp.inf)
        l_ref[...] = jnp.zeros_like(l_ref)
        acc_ref[...] = jnp.zeros_like(acc_ref)

    # Causal: KV tiles strictly above the diagonal skip compute (tq == tkv).
    @pl.when(ki <= qi)
    def _():
        k = k_ref[...].astype(jnp.float32)                        # (tk, D)
        k = k * ck_ref[...] + _rotate_half(k) * sk_ref[...]
        s = jax.lax.dot_general(qr_ref[...], k.astype(_MXU_DTYPE),
                                (((1,), (1,)), ((), ())),
                                preferred_element_type=jnp.float32)
        row = qi * tile + jax.lax.broadcasted_iota(jnp.int32, s.shape, 0)
        col = ki * tile + jax.lax.broadcasted_iota(jnp.int32, s.shape, 1)
        s = jnp.where(row >= col, s, -1e30)
        m_prev = m_ref[...]
        m_new = jnp.maximum(m_prev, jnp.max(s, axis=-1, keepdims=True))
        alpha = jnp.exp(m_prev - m_new)
        p = jnp.exp(s - m_new)
        l_ref[...] = alpha * l_ref[...] + jnp.sum(p, axis=-1, keepdims=True)
        acc_ref[...] = alpha * acc_ref[...] + jnp.dot(
            p.astype(_MXU_DTYPE), v_ref[...], preferred_element_type=jnp.float32)
        m_ref[...] = m_new

    @pl.when(ki == pl.num_programs(2) - 1)
    def _():
        o_ref[...] = (acc_ref[...] *
                      pl.reciprocal(l_ref[...], approx=True)).astype(o_ref.dtype)


def flash_attention(q, k, v, cos, sin, num_heads, num_kv_heads, scale):
    """q:(B*nH,S,D) bf16, k/v:(B*nKV,S,D) bf16, cos/sin:(B,S,D) f32."""
    BH, S, D = q.shape
    group = num_heads // num_kv_heads
    tile = _pick_tile(S, (256, 128))

    def q_idx(bh, qi, ki):
        return (bh, qi, 0)

    def kv_idx(bh, qi, ki):
        return ((bh // num_heads) * num_kv_heads + (bh % num_heads) // group,
                ki, 0)

    def cq_idx(bh, qi, ki):
        return (bh // num_heads, qi, 0)

    def ck_idx(bh, qi, ki):
        return (bh // num_heads, ki, 0)

    return pl.pallas_call(
        functools.partial(_flash_attn_kernel, scale=scale, tile=tile),
        out_shape=jax.ShapeDtypeStruct((BH, S, D), _MXU_DTYPE),
        grid=(BH, S // tile, S // tile),
        in_specs=[
            pl.BlockSpec((None, tile, D), q_idx),
            pl.BlockSpec((None, tile, D), kv_idx),
            pl.BlockSpec((None, tile, D), kv_idx),
            pl.BlockSpec((None, tile, D), cq_idx),
            pl.BlockSpec((None, tile, D), cq_idx),
            pl.BlockSpec((None, tile, D), ck_idx),
            pl.BlockSpec((None, tile, D), ck_idx),
        ],
        out_specs=pl.BlockSpec((None, tile, D), q_idx),
        scratch_shapes=[pltpu.VMEM((tile, D), _MXU_DTYPE),     # roped+scaled q
                        pltpu.VMEM((tile, 1), jnp.float32),    # running max
                        pltpu.VMEM((tile, 1), jnp.float32),    # running denom
                        pltpu.VMEM((tile, D), jnp.float32)],   # output acc
        compiler_params=pltpu.CompilerParams(
            dimension_semantics=("parallel", "parallel", "arbitrary")),
    )(q, k, v, cos, sin, cos, sin)


# ---------------------------------------------------------------------------
# Glue: RoPE tables, parameters, full forward
# ---------------------------------------------------------------------------

def rope_cos_sin(position_ids, head_dim, theta):
    inv_freq = 1.0 / (theta ** (jnp.arange(0, head_dim, 2, dtype=jnp.float32)
                                / head_dim))
    freqs = position_ids.astype(jnp.float32)[..., None] * inv_freq[None, None, :]
    emb = jnp.concatenate([freqs, freqs], axis=-1)               # (B, S, D)
    return jnp.cos(emb), jnp.sin(emb)


def init_params(key, cfg):
    H, I, V = cfg.hidden_size, cfg.intermediate_size, cfg.vocab_size
    nH, nKV, D = cfg.num_attention_heads, cfg.num_key_value_heads, cfg.head_dim
    n_dense = cfg.num_hidden_layers * 7 + 1
    keys = iter(jax.random.split(key, n_dense))

    def dense(shape):
        # Weights stored pre-transposed as (in_features, out_features), bf16.
        return (0.02 * jax.random.normal(next(keys), shape, dtype=jnp.float32)
                ).astype(_MXU_DTYPE)

    layers = []
    for _ in range(cfg.num_hidden_layers):
        layers.append({
            "input_ln": jnp.zeros((H,), jnp.float32),            # Gemma norm init
            "post_ln": jnp.zeros((H,), jnp.float32),
            "wq": dense((H, nH * D)),
            "wk": dense((H, nKV * D)),
            "wv": dense((H, nKV * D)),
            "wo": dense((nH * D, H)),
            "wg": dense((H, I)),
            "wu": dense((H, I)),
            "wd": dense((I, H)),
        })
    return {
        "layers": layers,
        "final_ln": jnp.zeros((H,), jnp.float32),
        "lm_head": dense((H, V)),
    }


def gemma_forward(params, inputs_embeds, attention_mask, position_ids, cfg,
                  kv_cache=None):
    # TODO(synk): attention_mask is accepted for API parity; the attention
    # kernel builds the causal (prefill) mask in-kernel. Arbitrary additive
    # masks and decode-time KV-cache updates are not modeled (KVCache is a
    # stub in the reference).
    del attention_mask
    B, S, H = inputs_embeds.shape
    nH, nKV, D = cfg.num_attention_heads, cfg.num_key_value_heads, cfg.head_dim
    V = cfg.vocab_size
    eps = cfg.rms_norm_eps
    scale = 1.0 / (cfg.head_dim ** 0.5)
    M = B * S

    # hidden_states *= sqrt(hidden_size)   (GemmaModel.forward)
    h = inputs_embeds.astype(jnp.float32) * jnp.float32(H ** 0.5)

    # cos/sin computed once per forward, reused by every layer inside the
    # attention kernel (small (B,S,D) table).
    cos, sin = rope_cos_sin(position_ids, D, cfg.rope_theta)

    for layer in params["layers"]:
        # --- self-attention block ---
        residual = h
        x = rmsnorm(h.reshape(M, H), layer["input_ln"], eps)          # bf16
        q, k, v = qkv_proj(x, layer["wq"], layer["wk"], layer["wv"])  # bf16
        q = q.reshape(B, S, nH, D).transpose(0, 2, 1, 3).reshape(B * nH, S, D)
        k = k.reshape(B, S, nKV, D).transpose(0, 2, 1, 3).reshape(B * nKV, S, D)
        v = v.reshape(B, S, nKV, D).transpose(0, 2, 1, 3).reshape(B * nKV, S, D)
        attn = flash_attention(q, k, v, cos, sin, nH, nKV, scale)     # bf16
        attn = attn.reshape(B, nH, S, D).transpose(0, 2, 1, 3).reshape(M, nH * D)
        h = residual + linear(attn, layer["wo"]).reshape(B, S, H)

        # --- MLP block ---
        residual = h
        x = rmsnorm(h.reshape(M, H), layer["post_ln"], eps)
        h = residual + gemma_mlp(x, layer["wg"], layer["wu"],
                                 layer["wd"]).reshape(B, S, H)

    hf = rmsnorm(h.reshape(M, H), params["final_ln"], eps)
    logits = linear(hf, params["lm_head"]).reshape(B, S, V)           # f32

    return_data = {"logits": logits}
    if kv_cache is not None:
        return_data["kv_cache"] = kv_cache
    return return_data


if __name__ == "__main__":
    cfg = GemmaConfig(
        vocab_size=256, hidden_size=64, intermediate_size=128,
        num_hidden_layers=2, num_attention_heads=4, num_key_value_heads=2,
        head_dim=32, max_position_embeddings=128)

    key = jax.random.PRNGKey(0)
    pkey, xkey = jax.random.split(key)
    params = init_params(pkey, cfg)

    B, S = 2, 8
    inputs_embeds = jax.random.normal(xkey, (B, S, cfg.hidden_size),
                                      dtype=jnp.float32)
    position_ids = jnp.broadcast_to(
        jnp.arange(S, dtype=jnp.int32)[None, :], (B, S))
    causal = jnp.tril(jnp.ones((S, S), dtype=jnp.bool_))
    attention_mask = jnp.where(causal, 0.0, -1e9).astype(jnp.float32)
    attention_mask = jnp.broadcast_to(attention_mask[None, None], (B, 1, S, S))

    out = gemma_forward(params, inputs_embeds, attention_mask, position_ids, cfg)
    logits = jax.block_until_ready(out["logits"])

    assert logits.shape == (B, S, cfg.vocab_size), logits.shape
    assert logits.dtype == jnp.float32
    assert bool(jnp.all(jnp.isfinite(logits)))
    print("KERNEL_OK")
</pallas_src>

<mosaic_0001>
module attributes {stable_mosaic.version = 11 : i64} {
  func.func @_rmsnorm_kernel(%arg0: i32, %arg1: memref<16x64xf32, #tpu.memory_space<vmem>>, %arg2: memref<1x64xf32, #tpu.memory_space<vmem>>, %arg3: memref<16x64xbf16, #tpu.memory_space<vmem>>) attributes {dimension_semantics = [#tpu.dimension_semantics<parallel>], iteration_bounds = array<i64: 1>, scalar_prefetch = 0 : i64, scratch_operands = 0 : i64, tpu.core_type = #tpu.core_type<tc>, window_params = [{transform_indices = @transform_0, window_bounds = array<i64: 16, 64>}, {pipeline_mode = #tpu.pipeline_mode<synchronous>, transform_indices = @transform_1, window_bounds = array<i64: 1, 64>}, {transform_indices = @transform_2, window_bounds = array<i64: 16, 64>}]} {
    %c0 = arith.constant 0 : index
    %c0_0 = arith.constant 0 : index
    %0 = vector.load %arg1[%c0, %c0_0] : memref<16x64xf32, #tpu.memory_space<vmem>>, vector<16x64xf32>
    %1 = arith.mulf %0, %0 : vector<16x64xf32>
    %cst = arith.constant dense<0.000000e+00> : vector<16xf32>
    %2 = vector.multi_reduction <add>, %1, %cst [1] : vector<16x64xf32> to vector<16xf32>
    %3 = vector.shape_cast %2 : vector<16xf32> to vector<16x1xf32>
    %cst_1 = arith.constant 6.400000e+01 : f32
    %4 = vector.broadcast %cst_1 : f32 to vector<16x1xf32>
    %5 = arith.divf %3, %4 : vector<16x1xf32>
    %cst_2 = arith.constant 9.99999997E-7 : f32
    %6 = vector.broadcast %cst_2 : f32 to vector<16x1xf32>
    %7 = arith.addf %5, %6 : vector<16x1xf32>
    %8 = math.rsqrt %7 : vector<16x1xf32>
    %9 = vector.broadcast %8 : vector<16x1xf32> to vector<16x64xf32>
    %10 = arith.mulf %0, %9 : vector<16x64xf32>
    %c0_3 = arith.constant 0 : index
    %c0_4 = arith.constant 0 : index
    %11 = vector.load %arg2[%c0_3, %c0_4] : memref<1x64xf32, #tpu.memory_space<vmem>>, vector<1x64xf32>
    %cst_5 = arith.constant 1.000000e+00 : f32
    %12 = vector.broadcast %cst_5 : f32 to vector<1x64xf32>
    %13 = arith.addf %12, %11 : vector<1x64xf32>
    %14 = vector.broadcast %13 : vector<1x64xf32> to vector<16x64xf32>
    %15 = arith.mulf %10, %14 : vector<16x64xf32>
    %16 = arith.truncf %15 : vector<16x64xf32> to vector<16x64xbf16>
    %c0_6 = arith.constant 0 : index
    %c0_7 = arith.constant 0 : index
    %17 = vector.load %arg3[%c0_6, %c0_7] : memref<16x64xbf16, #tpu.memory_space<vmem>>, vector<16x64xbf16>
    tpu.vector_store %arg3[%c0_6, %c0_7], %16 {strides = array<i32>} : memref<16x64xbf16, #tpu.memory_space<vmem>>, vector<16x64xbf16>,
    return
  }
  func.func @transform_0(%arg0: i32) -> (i32, i32) {
    %c0_i32 = arith.constant 0 : i32
    %c0_i32_0 = arith.constant 0 : i32
    return %arg0, %c0_i32 : i32, i32
  }
  func.func @transform_1(%arg0: i32) -> (i32, i32) {
    %c0_i32 = arith.constant 0 : i32
    %c0_i32_0 = arith.constant 0 : i32
    %c0_i32_1 = arith.constant 0 : i32
    return %c0_i32, %c0_i32_0 : i32, i32
  }
  func.func @transform_2(%arg0: i32) -> (i32, i32) {
    %c0_i32 = arith.constant 0 : i32
    %c0_i32_0 = arith.constant 0 : i32
    return %arg0, %c0_i32 : i32, i32
  }
}

</mosaic_0001>

<llo_original>
// kernel: tpu_custom_call.1
$region0: #{tpu_custom_call.1}
  #allocation0 [shape = 'u32[]', space=smem, size = 0x4, offset = 0x4, fixed_abs, tag = 'smem constant byte address 0x4 - core index']
  #allocation1 [shape = 'u32[144,128]{1,0:T(1,128)}', space=vmem, size = 0x12000, scoped, tag = 'internal scratch']
  %s0 = inlined_call_operand.hbm [shape: f32[16,64], index: 0, kind: input, shape index: {}]
  %s1 = inlined_call_operand.vmem [shape: f32[1,64], index: 1, kind: input, shape index: {}]
  %s2 = inlined_call_operand.hbm [shape: bf16[16,64], index: 2, kind: output, shape index: {}]
  %s3 = sld [smem:[#allocation0]]
  $region22: #{tpu_custom_call.1} parent=0
    _
  %s5 = ssub.s32 1, %s3
  %s6 = scalar_select 0, %s5, %s3
  $region1: #{tpu_custom_call.1} parent=0
    #allocation2 [shape = 'u8[8192]{0}', space=vmem, size = 0x2000, scoped, tag = 'input window, operand 0, single buffered']
    #allocation3 [shape = 's32[1]{0}', space=sflag, size = 0x4, scoped, tag = 'scoped memory for tpu_custom_call.1']
    #allocation4 [shape = 's32[1]{0}', space=sflag, size = 0x4, scoped, tag = 'scoped memory for tpu_custom_call.1']
    #allocation5 [shape = 'u8[4096]{0}', space=vmem, size = 0x1000, scoped, tag = 'output window, operand 0, single buffered']
    %7 = vsyncpa [#allocation3], 0
    %8 = vsyncpa [#allocation4], 0
    // Predicated region
    $region2: #{tpu_custom_call.1} parent=1 // pred_check
      _
    $region3: #{tpu_custom_call.1} parent=1 // pred_check_branch
      %10 = sbr.rel (0) target = $region5
    $region4: #{tpu_custom_call.1} parent=1 // pred_region
      %s12 = ssub.s32 256, 256
      %13 = vsyncadd [#allocation3], %s12
      %s14 = sshll.u32 [#allocation2], 4
      %s15 = int_to_ptr.vmem [resolvable:$true] %s14
      %20 = dma.hbm_to_vmem [thread:$0]  %s0, 256, %s15, [#allocation3], 128, 128, 8
    $region5: #{tpu_custom_call.1} parent=1 // pred_fallthru
      _
    // Predicated region
    $region6: #{tpu_custom_call.1} parent=1 // pred_check
      _
    $region7: #{tpu_custom_call.1} parent=1 // pred_check_branch
      %22 = sbr.rel (0) target = $region9
    $region8: #{tpu_custom_call.1} parent=1 // pred_region
      _
    $region9: #{tpu_custom_call.1} parent=1 // pred_fallthru
      _
    // Predicated region
    $region10: #{tpu_custom_call.1} parent=1 // pred_check
      _
    $region11: #{tpu_custom_call.1} parent=1 // pred_check_branch
      %24 = sbr.rel (0) target = $region13
    $region12: #{tpu_custom_call.1} parent=1 // pred_region
      %25 = dma.done [#allocation3], 256
    $region13: #{tpu_custom_call.1} parent=1 // pred_fallthru
      _
    %v26 = vld [vmem:[#allocation2] sm:$0xff]
    %v27 = vld [vmem:[#allocation2 + $0x8] sm:$0xff]
    %v28 = vmul.f32 %v26, %v26
    %v29 = vmul.f32 %v27, %v27
    %vm30 = vcmask 523264
    %v31 = vsel %vm30, %v28, 0.0
    %32 = vadd.xlane.f32.xlu0 %v31
    %v33 = vpop.xlane.xlu0 %32
    %v34 = vsel %vm30, %v29, 0.0
    %35 = vadd.xlane.f32.xlu0 %v34
    %v36 = vpop.xlane.xlu0 %35
    %v37 = vrcp.pop 64.0
    %v38 = vmul.f32 %v33, %v37
    %v39 = vmul.f32 %v36, %v37
    %v40 = vadd.f32 %v38, 1e-06
    %v41 = vadd.f32 %v39, 1e-06
    %v42 = vrsqrt.pop %v40
    %v43 = vrsqrt.pop %v41
    %v44 = vmul.f32 %v26, %v42
    %v45 = vmul.f32 %v27, %v43
    %v46 = vld [vmem:[%s1] sm:$0x1]
    %v47 = vadd.f32 %v46, 1.0
    %v49 = vlaneseq
    %v50 = vshrl.u32 %v49, 7
    %v51 = vsub.s32 0, %v50
    %v52 = vrot.slane %v47, %v51
    %v54 = vmul.f32 %v44, %v52
    %v55 = vmul.f32 %v45, %v52
    %v56 = vpack.c.bf16 %v55, %v54
    %v58 = vunpack.c.l.b16 %v56
    %v59 = vunpack.c.h.b16 %v56
    %v60 = vpack.c.b16 %v58, %v58
    %v61 = vpack.c.b16 %v59, %v59
    %vm64 = vcmask 519168
    %65 = vst.msk [vmem:[#allocation5] sm:$0xf] %vm64, %v60
    %66 = vst.msk [vmem:[#allocation5 + $0x4] sm:$0xf] %vm64, %v61
    // Predicated region
    $region14: #{tpu_custom_call.1} parent=1 // pred_check
      _
    $region15: #{tpu_custom_call.1} parent=1 // pred_check_branch
      %68 = sbr.rel (0) target = $region17
    $region16: #{tpu_custom_call.1} parent=1 // pred_region
      %s70 = ssub.s32 128, 128
      %71 = vsyncadd [#allocation4], %s70
      %s72 = sshll.u32 [#allocation5], 4
      %s73 = int_to_ptr.vmem [resolvable:$true] %s72
      %78 = dma.vmem_to_hbm [thread:$0]  %s73, 128, %s2, [#allocation4], 64, 64, 4
    $region17: #{tpu_custom_call.1} parent=1 // pred_fallthru
      _
    // Predicated region
    $region18: #{tpu_custom_call.1} parent=1 // pred_check
      _
    $region19: #{tpu_custom_call.1} parent=1 // pred_check_branch
      %80 = sbr.rel (0) target = $region21
    $region20: #{tpu_custom_call.1} parent=1 // pred_region
      %81 = dma.done [#allocation4], 128
    $region21: #{tpu_custom_call.1} parent=1 // pred_fallthru
      _
    %82 = vsyncpa [#allocation3], 1
    %83 = vsyncpa [#allocation4], 1

</llo_original>
